<compile_context>
chip_gen: v6e
topology: v6e:2x2x1
jax: 0.10.0
libtpu: 0.0.40
codegen_flags: <defaults>
</compile_context>

<pallas_src>
import jax
import jax.numpy as jnp
from jax.experimental import pallas as pl
from jax.experimental.pallas import tpu as pltpu

_LANES = 128
_ROWQ = 16        # row quantum: multiple of 16 covers f32 (8,128) and bf16 (16,128) tiles
_NUM_CORES = 2    # leading "parallel" grid axis; engages both TCs on v7x, harmless on 1-TC chips


def _round_up(x, m):
    return ((x + m - 1) // m) * m


def _make_ranknet_kernel(n, tr, g_total):
    """Kernel with static true length `n`, block rows `tr`, real block count `g_total`."""

    def kernel(pos_ref, neg_ref, prb_ref, out_ref, acc_ref):
        c = pl.program_id(0)            # parallel (core) axis
        j = pl.program_id(1)            # per-core reduction steps
        n_j = pl.num_programs(1)
        gi = c * n_j + j                # global row-block index (may exceed g_total-1)

        @pl.when(j == 0)
        def _init():
            acc_ref[...] = jnp.zeros_like(acc_ref)

        def partial_sum(masked):
            # Elementwise BCE-with-logits in f32 (numerically stable form).
            x = pos_ref[...].astype(jnp.float32) - neg_ref[...].astype(jnp.float32)
            p = prb_ref[...].astype(jnp.float32)
            per_elem = jnp.maximum(x, 0.0) - x * p + jnp.log1p(jnp.exp(-jnp.abs(x)))
            if masked:
                # Tail block only: discard pad / out-of-bounds garbage AFTER the
                # elementwise math (select safely drops any Inf/NaN from garbage).
                row_ids = jax.lax.broadcasted_iota(jnp.int32, (tr, _LANES), 0)
                lane_ids = jax.lax.broadcasted_iota(jnp.int32, (tr, _LANES), 1)
                local_flat = row_ids * _LANES + lane_ids
                limit = n - gi * (tr * _LANES)      # scalar: #valid elems in this block
                per_elem = jnp.where(local_flat < limit, per_elem, 0.0)
            # Fold (tr,128) -> (8,128): leading-axis reduce = pure vreg-wise adds.
            return jnp.sum(per_elem.reshape(tr // 8, 8, _LANES), axis=0)

        @pl.when(gi < g_total - 1)       # interior block: no mask on the hot path
        def _full_block():
            acc_ref[...] += partial_sum(False)

        @pl.when(gi == g_total - 1)      # single tail block: masked
        def _tail_block():
            acc_ref[...] += partial_sum(True)

        # gi >= g_total: clamped duplicate block (grid regularity only) -> skipped.

        @pl.when(j == n_j - 1)
        def _finalize():
            out_ref[0] = acc_ref[...]    # lane-dense (8,128) partial per core

    return kernel


def ranknet_loss(scores_pos, scores_neg, probs, *, block_rows=2048):
    """RankNet loss. Inputs: 1-D float arrays (f32 or bf16) of identical length N."""
    assert scores_pos.shape == scores_neg.shape == probs.shape
    n = int(scores_pos.size)
    assert n > 0

    rows = -(-n // _LANES)                               # ceil(N / 128)
    rows_per_core = _round_up(-(-rows // _NUM_CORES), _ROWQ)
    tr = max(_ROWQ, min(_round_up(int(block_rows), _ROWQ), rows_per_core))
    g_total = -(-rows // tr)                             # real row blocks
    j_steps = -(-g_total // _NUM_CORES)                  # blocks per core

    pad = rows * _LANES - n                              # <= 127; 0 when N % 128 == 0

    def prep(a):
        a = a.reshape(-1)
        if pad:
            a = jnp.pad(a, (0, pad))
        return a.reshape(rows, _LANES)

    pos2d = prep(scores_pos)
    neg2d = prep(scores_neg)
    prb2d = prep(probs)

    def in_map(c, j):
        # Clamp so duplicate trailing steps fetch a valid block (kernel skips them).
        return (jnp.minimum(c * j_steps + j, g_total - 1), 0)

    partials = pl.pallas_call(
        _make_ranknet_kernel(n, tr, g_total),
        out_shape=jax.ShapeDtypeStruct((_NUM_CORES, 8, _LANES), jnp.float32),
        grid_spec=pltpu.PrefetchScalarGridSpec(
            num_scalar_prefetch=0,
            grid=(_NUM_CORES, j_steps),
            in_specs=[
                pl.BlockSpec((tr, _LANES), in_map),
                pl.BlockSpec((tr, _LANES), in_map),
                pl.BlockSpec((tr, _LANES), in_map),
            ],
            out_specs=pl.BlockSpec((1, 8, _LANES), lambda c, j: (c, 0, 0)),
            scratch_shapes=[pltpu.VMEM((8, _LANES), jnp.float32)],
        ),
        compiler_params=pltpu.CompilerParams(
            dimension_semantics=("parallel", "arbitrary"),
        ),
    )(pos2d, neg2d, prb2d)

    # Tiny wrapper-side reduce of the 2 per-core (8,128) partials + mean scale.
    return jnp.sum(partials) * (1.0 / n)


def _ranknet_loss_ref(scores_pos, scores_neg, probs):
    x = scores_pos.astype(jnp.float32) - scores_neg.astype(jnp.float32)
    p = probs.astype(jnp.float32)
    per_elem = jnp.maximum(x, 0.0) - x * p + jnp.log1p(jnp.exp(-jnp.abs(x)))
    return jnp.mean(per_elem)


if __name__ == "__main__":
    # RankNetLoss has no learnable parameters; nothing to initialize.

    def make(n, dtype, key):
        kp, kn, kr = jax.random.split(key, 3)
        sp = (jax.random.normal(kp, (n,), dtype=jnp.float32) * 2.0).astype(dtype)
        sn = (jax.random.normal(kn, (n,), dtype=jnp.float32) * 2.0).astype(dtype)
        pr = jax.random.uniform(kr, (n,), dtype=jnp.float32).astype(dtype)
        return sp, sn, pr

    # Case 1: small N, not a multiple of 128 -> pad + tail-mask, single block.
    sp, sn, pr = make(300, jnp.float32, jax.random.PRNGKey(0))
    loss = jax.block_until_ready(ranknet_loss(sp, sn, pr))
    ref = _ranknet_loss_ref(sp, sn, pr)
    assert jnp.allclose(loss, ref, rtol=1e-5, atol=1e-5), (loss, ref)

    # Case 2: small block_rows -> 5 row blocks split over the 2-way parallel axis,
    # exercising init/accumulate/finalize, the unmasked interior path, the tail
    # mask, and the skipped clamped-duplicate step.
    sp2, sn2, pr2 = make(10000, jnp.float32, jax.random.PRNGKey(1))
    loss2 = jax.block_until_ready(ranknet_loss(sp2, sn2, pr2, block_rows=16))
    ref2 = _ranknet_loss_ref(sp2, sn2, pr2)
    assert jnp.allclose(loss2, ref2, rtol=1e-5, atol=1e-5), (loss2, ref2)

    # Case 3: bf16 inputs end-to-end (half HBM traffic); accumulation stays f32.
    sp3, sn3, pr3 = make(5000, jnp.bfloat16, jax.random.PRNGKey(2))
    loss3 = jax.block_until_ready(ranknet_loss(sp3, sn3, pr3))
    ref3 = _ranknet_loss_ref(sp3, sn3, pr3)
    assert jnp.allclose(loss3, ref3, rtol=1e-4, atol=1e-4), (loss3, ref3)

    print("KERNEL_OK")
</pallas_src>

<mosaic_0001>
module attributes {stable_mosaic.version = 11 : i64} {
  func.func @kernel(%arg0: i32, %arg1: i32, %arg2: memref<16x128xf32, #tpu.memory_space<vmem>>, %arg3: memref<16x128xf32, #tpu.memory_space<vmem>>, %arg4: memref<16x128xf32, #tpu.memory_space<vmem>>, %arg5: memref<1x8x128xf32, #tpu.memory_space<vmem>>, %arg6: memref<8x128xf32, #tpu.memory_space<vmem>>) attributes {dimension_semantics = [#tpu.dimension_semantics<parallel>, #tpu.dimension_semantics<arbitrary>], iteration_bounds = array<i64: 2, 1>, scalar_prefetch = 0 : i64, scratch_operands = 1 : i64, tpu.core_type = #tpu.core_type<tc>, window_params = [{transform_indices = @transform_0, window_bounds = array<i64: 16, 128>}, {transform_indices = @transform_1, window_bounds = array<i64: 16, 128>}, {transform_indices = @transform_2, window_bounds = array<i64: 16, 128>}, {transform_indices = @transform_3, window_bounds = array<i64: 1, 8, 128>}]} {
    %c1_i32 = arith.constant 1 : i32
    %0 = arith.muli %arg0, %c1_i32 : i32
    %1 = arith.addi %0, %arg1 : i32
    %c0_i32 = arith.constant 0 : i32
    %2 = arith.cmpi eq, %arg1, %c0_i32 : i32
    %3 = arith.extui %2 : i1 to i32
    %c0_i32_0 = arith.constant 0 : i32
    %4 = arith.cmpi ne, %3, %c0_i32_0 : i32
    scf.if %4 {
      %cst = arith.constant 0.000000e+00 : f32
      %14 = vector.broadcast %cst : f32 to vector<8x128xf32>
      %c0 = arith.constant 0 : index
      %c0_7 = arith.constant 0 : index
      %15 = vector.load %arg6[%c0, %c0_7] : memref<8x128xf32, #tpu.memory_space<vmem>>, vector<8x128xf32>
      tpu.vector_store %arg6[%c0, %c0_7], %14 {strides = array<i32>} : memref<8x128xf32, #tpu.memory_space<vmem>>, vector<8x128xf32>,
    } else {
    }
    %c0_i32_1 = arith.constant 0 : i32
    %5 = arith.cmpi slt, %1, %c0_i32_1 : i32
    %6 = arith.extui %5 : i1 to i32
    %c0_i32_2 = arith.constant 0 : i32
    %7 = arith.cmpi ne, %6, %c0_i32_2 : i32
    scf.if %7 {
      %c0 = arith.constant 0 : index
      %c0_7 = arith.constant 0 : index
      %14 = vector.load %arg6[%c0, %c0_7] : memref<8x128xf32, #tpu.memory_space<vmem>>, vector<8x128xf32>
      %c0_8 = arith.constant 0 : index
      %c0_9 = arith.constant 0 : index
      %15 = vector.load %arg2[%c0_8, %c0_9] : memref<16x128xf32, #tpu.memory_space<vmem>>, vector<16x128xf32>
      %c0_10 = arith.constant 0 : index
      %c0_11 = arith.constant 0 : index
      %16 = vector.load %arg3[%c0_10, %c0_11] : memref<16x128xf32, #tpu.memory_space<vmem>>, vector<16x128xf32>
      %17 = arith.subf %15, %16 : vector<16x128xf32>
      %c0_12 = arith.constant 0 : index
      %c0_13 = arith.constant 0 : index
      %18 = vector.load %arg4[%c0_12, %c0_13] : memref<16x128xf32, #tpu.memory_space<vmem>>, vector<16x128xf32>
      %cst = arith.constant 0.000000e+00 : f32
      %19 = vector.broadcast %cst : f32 to vector<16x128xf32>
      %20 = arith.maximumf %17, %19 : vector<16x128xf32>
      %21 = arith.mulf %17, %18 : vector<16x128xf32>
      %22 = arith.subf %20, %21 : vector<16x128xf32>
      %23 = math.absf %17 : vector<16x128xf32>
      %cst_14 = arith.constant 0.000000e+00 : f32
      %24 = vector.broadcast %cst_14 : f32 to vector<16x128xf32>
      %25 = arith.subf %24, %23 : vector<16x128xf32>
      %26 = math.exp %25 : vector<16x128xf32>
      %27 = math.log1p %26 : vector<16x128xf32>
      %28 = arith.addf %22, %27 : vector<16x128xf32>
      %29 = vector.shape_cast %28 : vector<16x128xf32> to vector<2x8x128xf32>
      %cst_15 = arith.constant dense<0.000000e+00> : vector<8x128xf32>
      %30 = vector.multi_reduction <add>, %29, %cst_15 [0] : vector<2x8x128xf32> to vector<8x128xf32>
      %31 = arith.addf %14, %30 : vector<8x128xf32>
      %c0_16 = arith.constant 0 : index
      %c0_17 = arith.constant 0 : index
      %32 = vector.load %arg6[%c0_16, %c0_17] : memref<8x128xf32, #tpu.memory_space<vmem>>, vector<8x128xf32>
      tpu.vector_store %arg6[%c0_16, %c0_17], %31 {strides = array<i32>} : memref<8x128xf32, #tpu.memory_space<vmem>>, vector<8x128xf32>,
    } else {
    }
    %c0_i32_3 = arith.constant 0 : i32
    %8 = arith.cmpi eq, %1, %c0_i32_3 : i32
    %9 = arith.extui %8 : i1 to i32
    %c0_i32_4 = arith.constant 0 : i32
    %10 = arith.cmpi ne, %9, %c0_i32_4 : i32
    scf.if %10 {
      %c0 = arith.constant 0 : index
      %c0_7 = arith.constant 0 : index
      %14 = vector.load %arg6[%c0, %c0_7] : memref<8x128xf32, #tpu.memory_space<vmem>>, vector<8x128xf32>
      %c0_8 = arith.constant 0 : index
      %c0_9 = arith.constant 0 : index
      %15 = vector.load %arg2[%c0_8, %c0_9] : memref<16x128xf32, #tpu.memory_space<vmem>>, vector<16x128xf32>
      %c0_10 = arith.constant 0 : index
      %c0_11 = arith.constant 0 : index
      %16 = vector.load %arg3[%c0_10, %c0_11] : memref<16x128xf32, #tpu.memory_space<vmem>>, vector<16x128xf32>
      %17 = arith.subf %15, %16 : vector<16x128xf32>
      %c0_12 = arith.constant 0 : index
      %c0_13 = arith.constant 0 : index
      %18 = vector.load %arg4[%c0_12, %c0_13] : memref<16x128xf32, #tpu.memory_space<vmem>>, vector<16x128xf32>
      %cst = arith.constant 0.000000e+00 : f32
      %19 = vector.broadcast %cst : f32 to vector<16x128xf32>
      %20 = arith.maximumf %17, %19 : vector<16x128xf32>
      %21 = arith.mulf %17, %18 : vector<16x128xf32>
      %22 = arith.subf %20, %21 : vector<16x128xf32>
      %23 = math.absf %17 : vector<16x128xf32>
      %cst_14 = arith.constant 0.000000e+00 : f32
      %24 = vector.broadcast %cst_14 : f32 to vector<16x128xf32>
      %25 = arith.subf %24, %23 : vector<16x128xf32>
      %26 = math.exp %25 : vector<16x128xf32>
      %27 = math.log1p %26 : vector<16x128xf32>
      %28 = arith.addf %22, %27 : vector<16x128xf32>
      %29 = tpu.iota {dimensions = array<i32: 0>} : vector<16x128xi32>
      %30 = tpu.iota {dimensions = array<i32: 1>} : vector<16x128xi32>
      %c128_i32 = arith.constant 128 : i32
      %31 = vector.broadcast %c128_i32 : i32 to vector<16x128xi32>
      %32 = arith.muli %29, %31 : vector<16x128xi32>
      %33 = arith.addi %32, %30 : vector<16x128xi32>
      %c2048_i32 = arith.constant 2048 : i32
      %34 = arith.muli %1, %c2048_i32 : i32
      %c300_i32 = arith.constant 300 : i32
      %35 = arith.subi %c300_i32, %34 : i32
      %36 = vector.broadcast %35 : i32 to vector<16x128xi32>
      %37 = arith.cmpi slt, %33, %36 : vector<16x128xi32>
      %cst_15 = arith.constant 0.000000e+00 : f32
      %38 = vector.broadcast %cst_15 : f32 to vector<16x128xf32>
      %39 = arith.select %37, %28, %38 : vector<16x128xi1>, vector<16x128xf32>
      %40 = vector.shape_cast %39 : vector<16x128xf32> to vector<2x8x128xf32>
      %cst_16 = arith.constant dense<0.000000e+00> : vector<8x128xf32>
      %41 = vector.multi_reduction <add>, %40, %cst_16 [0] : vector<2x8x128xf32> to vector<8x128xf32>
      %42 = arith.addf %14, %41 : vector<8x128xf32>
      %c0_17 = arith.constant 0 : index
      %c0_18 = arith.constant 0 : index
      %43 = vector.load %arg6[%c0_17, %c0_18] : memref<8x128xf32, #tpu.memory_space<vmem>>, vector<8x128xf32>
      tpu.vector_store %arg6[%c0_17, %c0_18], %42 {strides = array<i32>} : memref<8x128xf32, #tpu.memory_space<vmem>>, vector<8x128xf32>,
    } else {
    }
    %c0_i32_5 = arith.constant 0 : i32
    %11 = arith.cmpi eq, %arg1, %c0_i32_5 : i32
    %12 = arith.extui %11 : i1 to i32
    %c0_i32_6 = arith.constant 0 : i32
    %13 = arith.cmpi ne, %12, %c0_i32_6 : i32
    scf.if %13 {
      %c0 = arith.constant 0 : index
      %c0_7 = arith.constant 0 : index
      %14 = vector.load %arg6[%c0, %c0_7] : memref<8x128xf32, #tpu.memory_space<vmem>>, vector<8x128xf32>
      %c0_8 = arith.constant 0 : index
      %c0_9 = arith.constant 0 : index
      %c0_10 = arith.constant 0 : index
      %15 = vector.load %arg5[%c0_8, %c0_9, %c0_10] : memref<1x8x128xf32, #tpu.memory_space<vmem>>, vector<1x8x128xf32>
      %16 = vector.shape_cast %15 : vector<1x8x128xf32> to vector<8x128xf32>
      %17 = vector.shape_cast %14 : vector<8x128xf32> to vector<1x8x128xf32>
      tpu.vector_store %arg5[%c0_8, %c0_9, %c0_10], %17 {strides = array<i32>} : memref<1x8x128xf32, #tpu.memory_space<vmem>>, vector<1x8x128xf32>,
    } else {
    }
    return
  }
  func.func @transform_0(%arg0: i32, %arg1: i32) -> (i32, i32) {
    %c1_i32 = arith.constant 1 : i32
    %0 = arith.muli %arg0, %c1_i32 : i32
    %1 = arith.addi %0, %arg1 : i32
    %c0_i32 = arith.constant 0 : i32
    %2 = arith.minsi %1, %c0_i32 : i32
    %c0_i32_0 = arith.constant 0 : i32
    %c0_i32_1 = arith.constant 0 : i32
    return %2, %c0_i32_0 : i32, i32
  }
  func.func @transform_1(%arg0: i32, %arg1: i32) -> (i32, i32) {
    %c1_i32 = arith.constant 1 : i32
    %0 = arith.muli %arg0, %c1_i32 : i32
    %1 = arith.addi %0, %arg1 : i32
    %c0_i32 = arith.constant 0 : i32
    %2 = arith.minsi %1, %c0_i32 : i32
    %c0_i32_0 = arith.constant 0 : i32
    %c0_i32_1 = arith.constant 0 : i32
    return %2, %c0_i32_0 : i32, i32
  }
  func.func @transform_2(%arg0: i32, %arg1: i32) -> (i32, i32) {
    %c1_i32 = arith.constant 1 : i32
    %0 = arith.muli %arg0, %c1_i32 : i32
    %1 = arith.addi %0, %arg1 : i32
    %c0_i32 = arith.constant 0 : i32
    %2 = arith.minsi %1, %c0_i32 : i32
    %c0_i32_0 = arith.constant 0 : i32
    %c0_i32_1 = arith.constant 0 : i32
    return %2, %c0_i32_0 : i32, i32
  }
  func.func @transform_3(%arg0: i32, %arg1: i32) -> (i32, i32, i32) {
    %c0_i32 = arith.constant 0 : i32
    %c0_i32_0 = arith.constant 0 : i32
    %c0_i32_1 = arith.constant 0 : i32
    return %arg0, %c0_i32, %c0_i32_0 : i32, i32, i32
  }
}

</mosaic_0001>

<llo_original>
// kernel: tpu_custom_call.1
$region0: #{tpu_custom_call.1}
  #allocation0 [shape = 'u32[]', space=smem, size = 0x4, offset = 0x4, fixed_abs, tag = 'smem constant byte address 0x4 - core index']
  #allocation1 [shape = 'u32[144,128]{1,0:T(1,128)}', space=vmem, size = 0x12000, scoped, tag = 'internal scratch']
  #allocation2 [shape = 'f32[8,128]{1,0:T(8,128)}', space=vmem, size = 0x1000, scoped, tag = 'scratch operand']
  %s0 = inlined_call_operand.hbm [shape: f32[3,128], index: 0, kind: input, shape index: {}]
  %s1 = inlined_call_operand.hbm [shape: f32[3,128], index: 1, kind: input, shape index: {}]
  %s2 = inlined_call_operand.hbm [shape: f32[3,128], index: 2, kind: input, shape index: {}]
  %s3 = inlined_call_operand.hbm [shape: f32[2,8,128], index: 3, kind: output, shape index: {}]
  %s4 = sld [smem:[#allocation0]]
  $region73: #{tpu_custom_call.1} parent=0
    _
  %s6 = ssub.s32 1, %s4
  %s7 = scalar_select 0, %s6, %s4
  $region1: #{tpu_custom_call.1} parent=0
    #allocation3 [shape = 'u8[16384]{0}', space=vmem, size = 0x4000, scoped, tag = 'input window, operand 0']
    #allocation4 [shape = 's32[2]{0}', space=sflag, size = 0x8, scoped, tag = 'scoped memory for tpu_custom_call.1']
    #allocation5 [shape = 's32[2]{0}', space=sflag, size = 0x8, scoped, tag = 'scoped memory for tpu_custom_call.1']
    #allocation6 [shape = 'u8[16384]{0}', space=vmem, size = 0x4000, scoped, tag = 'input window, operand 1']
    #allocation7 [shape = 's32[2]{0}', space=sflag, size = 0x8, scoped, tag = 'scoped memory for tpu_custom_call.1']
    #allocation8 [shape = 'u8[16384]{0}', space=vmem, size = 0x4000, scoped, tag = 'input window, operand 2']
    #allocation9 [shape = 'u8[8192]{0}', space=vmem, size = 0x2000, scoped, tag = 'output window, operand 0']
    %8 = vsyncpa [#allocation4], 0
    %s9 = scalar_lea.sflag [#allocation4], 1
    %10 = vsyncpa %s9, 0
    %11 = vsyncpa [#allocation7], 0
    %s12 = scalar_lea.sflag [#allocation7], 1
    %13 = vsyncpa %s12, 0
    %14 = vsyncpa [#allocation5], 0
    %s15 = scalar_lea.sflag [#allocation5], 1
    %16 = vsyncpa %s15, 0
    loop: start=0, step=1, limit=4
    $region2: #{tpu_custom_call.1} parent=1 // loop_pre_header
      _
    $region3: #{tpu_custom_call.1} parent=1 // loop_header
      %s18 = sphi 0, %s22
      %p19 = scmp.ge.s32.totalorder %s18, 4
      %s25 = sphi 0, %s37
      %s26 = sphi 0, %s33
      %s27 = sphi 0, %s25
      %s28 = sphi 0, %s26
      %s29 = sphi 0, %s27
      %s30 = sphi 0, %s28
      %s46 = sphi 0, %s48
      %s49 = sphi 0, %s46
      %s50 = sphi 0, %s49
      %s66 = sphi 0, %s50
      %s78 = sphi 0, %s80
      %s81 = sphi 0, %s78
      %s82 = sphi 0, %s81
      %s98 = sphi 0, %s82
      %s110 = sphi 0, %s112
      %s113 = sphi 0, %s110
      %s114 = sphi 0, %s113
      %s130 = sphi 0, %s114
      %s136 = sphi 0, %s138
      %s139 = sphi 0, %s136
      %s140 = sphi 0, %s139
      %s156 = sphi 0, %s140
    $region4: #{tpu_custom_call.1} parent=1 // loop_header_branch
      %21 = sbr.rel (%p19) target = $region8
    $region5: #{tpu_custom_call.1} parent=1 // loop_body
      %s23 = ssub.s32 %s18, 1
      %s24 = ssub.s32 %s18, 2
      %s31 = sadd.s32 1, %s26
      %p32 = scmp.ge.s32.totalorder %s31, 1
      %s33 = scalar_select %p32, 0, %s31
      %s34 = sadd.s32 1, %s25
      %s35 = scalar_select %p32, %s34, %s25
      %p36 = scmp.ge.s32.totalorder %s35, 2
      %s37 = scalar_select %p36, 0, %s35
      %s38 = sadd.s32 %s25, %s26
      %p39 = scmp.lt.s32.totalorder %s38, 0
      %s40 = scalar_select %p39, %s38, 0
      %s41 = sadd.s32 %s37, %s33
      %p42 = scmp.lt.s32.totalorder %s41, 0
      %s43 = scalar_select %p42, %s41, 0
      %s44 = ssub.s32 %s40, %s43
      %p45 = scmp.eq.s32.totalorder %s44, 0
      %s47 = sadd.s32 %s46, 1
      %s48 = scalar_select %p45, %s46, %s47
      %p51 = pneg %p45
      %p52 = scmp.eq.s32.totalorder %s18, 1
      %p53 = por %p51, %p52
      %p54 = scmp.ne.s32.totalorder %s46, %s49
      %p55 = scmp.eq.s32.totalorder %s18, 0
      %p56 = por %p54, %p55
      %p57 = scmp.ne.s32.totalorder %s46, %s49
      %p58 = scmp.eq.s32.totalorder %s23, 1
      %p59 = por %p57, %p58
      %p60 = scmp.ne.s32.totalorder %s49, %s50
      %p61 = scmp.eq.s32.totalorder %s23, 0
      %p62 = por %p60, %p61
      %p63 = scmp.ne.s32.totalorder %s49, %s50
      %p64 = scmp.eq.s32.totalorder %s24, 1
      %p65 = por %p63, %p64
      %p67 = scmp.ne.s32.totalorder %s50, %s66
      %p68 = scmp.eq.s32.totalorder %s24, 0
      %p69 = por %p67, %p68
      %s70 = sadd.s32 %s25, %s26
      %p71 = scmp.lt.s32.totalorder %s70, 0
      %s72 = scalar_select %p71, %s70, 0
      %s73 = sadd.s32 %s37, %s33
      %p74 = scmp.lt.s32.totalorder %s73, 0
      %s75 = scalar_select %p74, %s73, 0
      %s76 = ssub.s32 %s72, %s75
      %p77 = scmp.eq.s32.totalorder %s76, 0
      %s79 = sadd.s32 %s78, 1
      %s80 = scalar_select %p77, %s78, %s79
      %p83 = pneg %p77
      %p84 = scmp.eq.s32.totalorder %s18, 1
      %p85 = por %p83, %p84
      %p86 = scmp.ne.s32.totalorder %s78, %s81
      %p87 = scmp.eq.s32.totalorder %s18, 0
      %p88 = por %p86, %p87
      %p89 = scmp.ne.s32.totalorder %s78, %s81
      %p90 = scmp.eq.s32.totalorder %s23, 1
      %p91 = por %p89, %p90
      %p92 = scmp.ne.s32.totalorder %s81, %s82
      %p93 = scmp.eq.s32.totalorder %s23, 0
      %p94 = por %p92, %p93
      %p95 = scmp.ne.s32.totalorder %s81, %s82
      %p96 = scmp.eq.s32.totalorder %s24, 1
      %p97 = por %p95, %p96
      %p99 = scmp.ne.s32.totalorder %s82, %s98
      %p100 = scmp.eq.s32.totalorder %s24, 0
      %p101 = por %p99, %p100
      %s102 = sadd.s32 %s25, %s26
      %p103 = scmp.lt.s32.totalorder %s102, 0
      %s104 = scalar_select %p103, %s102, 0
      %s105 = sadd.s32 %s37, %s33
      %p106 = scmp.lt.s32.totalorder %s105, 0
      %s107 = scalar_select %p106, %s105, 0
      %s108 = ssub.s32 %s104, %s107
      %p109 = scmp.eq.s32.totalorder %s108, 0
      %s111 = sadd.s32 %s110, 1
      %s112 = scalar_select %p109, %s110, %s111
      %p115 = pneg %p109
      %p116 = scmp.eq.s32.totalorder %s18, 1
      %p117 = por %p115, %p116
      %p118 = scmp.ne.s32.totalorder %s110, %s113
      %p119 = scmp.eq.s32.totalorder %s18, 0
      %p120 = por %p118, %p119
      %p121 = scmp.ne.s32.totalorder %s110, %s113
      %p122 = scmp.eq.s32.totalorder %s23, 1
      %p123 = por %p121, %p122
      %p124 = scmp.ne.s32.totalorder %s113, %s114
      %p125 = scmp.eq.s32.totalorder %s23, 0
      %p126 = por %p124, %p125
      %p127 = scmp.ne.s32.totalorder %s113, %s114
      %p128 = scmp.eq.s32.totalorder %s24, 1
      %p129 = por %p127, %p128
      %p131 = scmp.ne.s32.totalorder %s114, %s130
      %p132 = scmp.eq.s32.totalorder %s24, 0
      %p133 = por %p131, %p132
      %s134 = ssub.s32 %s25, %s37
      %p135 = scmp.eq.s32.totalorder %s134, 0
      %s137 = sadd.s32 %s136, 1
      %s138 = scalar_select %p135, %s136, %s137
      %p141 = pneg %p135
      %p142 = scmp.eq.s32.totalorder %s18, 1
      %p143 = por %p141, %p142
      %p144 = scmp.ne.s32.totalorder %s136, %s139
      %p145 = scmp.eq.s32.totalorder %s18, 0
      %p146 = por %p144, %p145
      %p147 = scmp.ne.s32.totalorder %s136, %s139
      %p148 = scmp.eq.s32.totalorder %s23, 1
      %p149 = por %p147, %p148
      %p150 = scmp.ne.s32.totalorder %s139, %s140
      %p151 = scmp.eq.s32.totalorder %s23, 0
      %p152 = por %p150, %p151
      %p153 = scmp.ne.s32.totalorder %s139, %s140
      %p154 = scmp.eq.s32.totalorder %s24, 1
      %p155 = por %p153, %p154
      %p157 = scmp.ne.s32.totalorder %s140, %s156
      %p158 = scmp.eq.s32.totalorder %s24, 0
      %p159 = por %p157, %p158
      %p160 = scmp.le.s32.totalorder 1, %s18
      %p161 = scmp.lt.s32.totalorder %s18, 3
      %p162 = pnand %p160, %p161
      %p163 = pneg %p162
      // Predicated region
      $region9: #{tpu_custom_call.1} parent=5 // pred_check
        _
      $region10: #{tpu_custom_call.1} parent=5 // pred_check_branch
        %165 = sbr.rel (%p162) target = $region12
      $region11: #{tpu_custom_call.1} parent=5 // pred_region
        %s166 = ssub.s32 %s18, 1
      $region12: #{tpu_custom_call.1} parent=5 // pred_fallthru
        _
      %p167 = scmp.lt.s32.totalorder %s18, 2
      // Predicated region
      $region13: #{tpu_custom_call.1} parent=5 // pred_check
        %p168 = pneg %p167
      $region14: #{tpu_custom_call.1} parent=5 // pred_check_branch
        %170 = sbr.rel (%p168) target = $region16
      $region15: #{tpu_custom_call.1} parent=5 // pred_region
        // Predicated region
        $region17: #{tpu_custom_call.1} parent=15 // pred_check
          %p171 = pneg %p56
        $region18: #{tpu_custom_call.1} parent=15 // pred_check_branch
          %173 = sbr.rel (%p171) target = $region20
        $region19: #{tpu_custom_call.1} parent=15 // pred_region
          %s174 = sand.u32 %s46, 1
          %s175 = scalar_lea.sflag [#allocation4], %s174
          %s176 = sand.u32 %s46, 1
          %s177 = smul.addr %s176, 16
          %s178 = scalar_lea.vmem [#allocation3], %s177
          %s179 = sadd.s32 %s25, %s26
          %p180 = scmp.lt.s32.totalorder %s179, 0
          %s181 = scalar_select %p180, %s179, 0
          %s182 = smul.u32 4, %s181
          %s183 = ssub.s32 1, %s182
          %s184 = smul.u32 64, %s183
          %s186 = ssub.s32 256, %s184
          %187 = vsyncadd %s175, %s186
          %p188 = scmp.ne.s32.totalorder 0, %s184
          %s189 = smul.addr %s182, 64
          %s190 = scalar_lea.hbm %s0, %s189
          %s191 = smul.u32 4, %s183
          %s192 = sshll.u32 %s178, 4
          %s193 = int_to_ptr.vmem [resolvable:$true] %s192
          %s194 = sshll.u32 %s191, 4
          %198 = dma.hbm_to_vmem [thread:$0]  (%p188), %s190, %s194, %s193, %s175, 64, 64, 4
        $region20: #{tpu_custom_call.1} parent=15 // pred_fallthru
          _
        // Predicated region
        $region21: #{tpu_custom_call.1} parent=15 // pred_check
          %p199 = pneg %p88
        $region22: #{tpu_custom_call.1} parent=15 // pred_check_branch
          %201 = sbr.rel (%p199) target = $region24
        $region23: #{tpu_custom_call.1} parent=15 // pred_region
          %s202 = sand.u32 %s18, 1
          %s203 = scalar_lea.sflag [#allocation7], %s202
          %s204 = sand.u32 %s78, 1
          %s205 = smul.addr %s204, 16
          %s206 = scalar_lea.vmem [#allocation6], %s205
          %s207 = sadd.s32 %s25, %s26
          %p208 = scmp.lt.s32.totalorder %s207, 0
          %s209 = scalar_select %p208, %s207, 0
          %s210 = smul.u32 4, %s209
          %s211 = ssub.s32 1, %s210
          %s212 = smul.u32 64, %s211
          %s214 = ssub.s32 256, %s212
          %215 = vsyncadd %s203, %s214
          %p216 = scmp.ne.s32.totalorder 0, %s212
          %s217 = smul.addr %s210, 64
          %s218 = scalar_lea.hbm %s1, %s217
          %s219 = smul.u32 4, %s211
          %s220 = sshll.u32 %s206, 4
          %s221 = int_to_ptr.vmem [resolvable:$true] %s220
          %s222 = sshll.u32 %s219, 4
          %226 = dma.hbm_to_vmem [thread:$0]  (%p216), %s218, %s222, %s221, %s203, 64, 64, 4
        $region24: #{tpu_custom_call.1} parent=15 // pred_fallthru
          _
        // Predicated region
        $region25: #{tpu_custom_call.1} parent=15 // pred_check
          %p227 = pneg %p120
        $region26: #{tpu_custom_call.1} parent=15 // pred_check_branch
          %229 = sbr.rel (%p227) target = $region28
        $region27: #{tpu_custom_call.1} parent=15 // pred_region
          %s230 = sand.u32 %s18, 1
          %s231 = scalar_lea.sflag [#allocation7], %s230
          %s232 = sand.u32 %s110, 1
          %s233 = smul.addr %s232, 16
          %s234 = scalar_lea.vmem [#allocation8], %s233
          %s235 = sadd.s32 %s25, %s26
          %p236 = scmp.lt.s32.totalorder %s235, 0
          %s237 = scalar_select %p236, %s235, 0
          %s238 = smul.u32 4, %s237
          %s239 = ssub.s32 1, %s238
          %s240 = smul.u32 64, %s239
          %s242 = ssub.s32 256, %s240
          %243 = vsyncadd %s231, %s242
          %p244 = scmp.ne.s32.totalorder 0, %s240
          %s245 = smul.addr %s238, 64
          %s246 = scalar_lea.hbm %s2, %s245
          %s247 = smul.u32 4, %s239
          %s248 = sshll.u32 %s234, 4
          %s249 = int_to_ptr.vmem [resolvable:$true] %s248
          %s250 = sshll.u32 %s247, 4
          %254 = dma.hbm_to_vmem [thread:$0]  (%p244), %s246, %s250, %s249, %s231, 64, 64, 4
        $region28: #{tpu_custom_call.1} parent=15 // pred_fallthru
          _
      $region16: #{tpu_custom_call.1} parent=5 // pred_fallthru
        _
      %p255 = scmp.le.s32.totalorder 1, %s18
      %p256 = scmp.lt.s32.totalorder %s18, 3
      %p257 = pnand %p255, %p256
      %p258 = pneg %p257
      // Predicated region
      $region29: #{tpu_custom_call.1} parent=5 // pred_check
        _
      $region30: #{tpu_custom_call.1} parent=5 // pred_check_branch
        %260 = sbr.rel (%p257) target = $region32
      $region31: #{tpu_custom_call.1} parent=5 // pred_region
        %s261 = ssub.s32 %s18, 1
        %s262 = sand.u32 %s49, 1
        %s263 = scalar_lea.sflag [#allocation4], %s262
        %s264 = sand.u32 %s49, 1
        %s265 = smul.addr %s264, 16
        %s266 = scalar_lea.vmem [#allocation3], %s265
        // Predicated region
        $region33: #{tpu_custom_call.1} parent=31 // pred_check
          %p267 = pneg %p62
        $region34: #{tpu_custom_call.1} parent=31 // pred_check_branch
          %269 = sbr.rel (%p267) target = $region36
        $region35: #{tpu_custom_call.1} parent=31 // pred_region
          %270 = dma.done %s263, 256
        $region36: #{tpu_custom_call.1} parent=31 // pred_fallthru
          _
        %s271 = sand.u32 %s23, 1
        %s272 = scalar_lea.sflag [#allocation7], %s271
        %s273 = sand.u32 %s81, 1
        %s274 = smul.addr %s273, 16
        %s275 = scalar_lea.vmem [#allocation6], %s274
        // Predicated region
        $region37: #{tpu_custom_call.1} parent=31 // pred_check
          %p276 = pneg %p94
        $region38: #{tpu_custom_call.1} parent=31 // pred_check_branch
          %278 = sbr.rel (%p276) target = $region40
        $region39: #{tpu_custom_call.1} parent=31 // pred_region
          %279 = dma.done %s272, 256
        $region40: #{tpu_custom_call.1} parent=31 // pred_fallthru
          _
        %s280 = sand.u32 %s23, 1
        %s281 = scalar_lea.sflag [#allocation7], %s280
        %s282 = sand.u32 %s113, 1
        %s283 = smul.addr %s282, 16
        %s284 = scalar_lea.vmem [#allocation8], %s283
        // Predicated region
        $region41: #{tpu_custom_call.1} parent=31 // pred_check
          %p285 = pneg %p126
        $region42: #{tpu_custom_call.1} parent=31 // pred_check_branch
          %287 = sbr.rel (%p285) target = $region44
        $region43: #{tpu_custom_call.1} parent=31 // pred_region
          %288 = dma.done %s281, 256
        $region44: #{tpu_custom_call.1} parent=31 // pred_fallthru
          _
        %s289 = sand.u32 %s49, 1
        %s290 = scalar_lea.sflag [#allocation4], %s289
        %s291 = sand.u32 %s49, 1
        %s292 = smul.addr %s291, 16
        %s293 = scalar_lea.vmem [#allocation3], %s292
        %p294 = pneg %p62
        %p295 = pneg %p59
        %s296 = sand.u32 %s23, 1
        %s297 = scalar_lea.sflag [#allocation7], %s296
        %s298 = sand.u32 %s81, 1
        %s299 = smul.addr %s298, 16
        %s300 = scalar_lea.vmem [#allocation6], %s299
        %p301 = pneg %p94
        %p302 = pneg %p91
        %s303 = sand.u32 %s23, 1
        %s304 = scalar_lea.sflag [#allocation7], %s303
        %s305 = sand.u32 %s113, 1
        %s306 = smul.addr %s305, 16
        %s307 = scalar_lea.vmem [#allocation8], %s306
        %p308 = pneg %p126
        %p309 = pneg %p123
        %p310 = pneg %p152
        %p311 = pneg %p149
        %s312 = sand.u32 %s139, 1
        %s313 = scalar_lea.sflag [#allocation5], %s312
        %s314 = sand.u32 %s139, 1
        %s315 = smul.addr %s314, 8
        %s316 = scalar_lea.vmem [#allocation9], %s315
        %s317 = sadd.s32 %s27, %s28
        %p318 = scmp.lt.s32.totalorder %s317, 0
        %s319 = scalar_select %p318, %s317, 0
        %s320 = smul.u32 4, %s319
        %s321 = ssub.s32 1, %s320
        %s322 = smul.u32 64, %s321
        %s323 = sadd.s32 %s27, %s28
        %p324 = scmp.lt.s32.totalorder %s323, 0
        %s325 = scalar_select %p324, %s323, 0
        %s326 = smul.u32 4, %s325
        %s327 = ssub.s32 1, %s326
        %s328 = smul.u32 64, %s327
        %s329 = sadd.s32 %s27, %s28
        %p330 = scmp.lt.s32.totalorder %s329, 0
        %s331 = scalar_select %p330, %s329, 0
        %s332 = smul.u32 4, %s331
        %s333 = ssub.s32 1, %s332
        %s334 = smul.u32 64, %s333
        %s335 = sadd.s32 %s27, %s28
        %p336 = scmp.eq.s32.totalorder %s28, 0
        // Predicated region
        $region45: #{tpu_custom_call.1} parent=31 // pred_check
          %p337 = pneg %p336
        $region46: #{tpu_custom_call.1} parent=31 // pred_check_branch
          %339 = sbr.rel (%p337) target = $region48
        $region47: #{tpu_custom_call.1} parent=31 // pred_region
          %340 = vst [vmem:[#allocation2] sm:$0xff] 0.0
        $region48: #{tpu_custom_call.1} parent=31 // pred_fallthru
          _
        %p341 = scmp.lt.s32.totalorder %s335, 0
        // Predicated region
        $region49: #{tpu_custom_call.1} parent=31 // pred_check
          %p342 = pneg %p341
        $region50: #{tpu_custom_call.1} parent=31 // pred_check_branch
          %344 = sbr.rel (%p342) target = $region52
        $region51: #{tpu_custom_call.1} parent=31 // pred_region
          %v345 = vld [vmem:[#allocation2] sm:$0xff]
          %v346 = vld [vmem:[%s266] sm:$0xff]
          %v347 = vld [vmem:[%s266 + $0x8] sm:$0xff]
          %v348 = vld [vmem:[%s275] sm:$0xff]
          %v349 = vld [vmem:[%s275 + $0x8] sm:$0xff]
          %v350 = vsub.f32 %v346, %v348
          %v351 = vsub.f32 %v347, %v349
          %v352 = vld [vmem:[%s284] sm:$0xff]
          %v353 = vld [vmem:[%s284 + $0x8] sm:$0xff]
          %v354 = vmax.f32 %v350, 0.0
          %v355 = vmax.f32 %v351, 0.0
          %v356 = vmul.f32 %v350, %v352
          %v357 = vmul.f32 %v351, %v353
          %v358 = vsub.f32 %v354, %v356
          %v359 = vsub.f32 %v355, %v357
          %v360 = vand.u32 2147483647, %v350
          %v361 = vand.u32 2147483647, %v351
          %v362 = vsub.f32 0.0, %v360
          %v363 = vsub.f32 0.0, %v361
          %v364 = vmul.f32 %v362, 1.442695
          %v365 = vpow.pop %v364
          %v366 = vmul.f32 %v363, 1.442695
          %v367 = vpow.pop %v366
          %v368 = vadd.f32 %v365, 1.0
          %v369 = vlog2.pop %v368
          %v370 = vmul.f32 %v369, 0.6931472
          %v371 = vmul.f32 -0.5, %v365
          %v372 = vadd.f32 %v371, 1.0
          %v373 = vmul.f32 %v372, %v365
          %v374 = vand.u32 2147483647, %v365
          %vm375 = vcmp.lt.f32.partialorder %v374, 0.0004427343
          %v376 = vsel %vm375, %v373, %v370
          %v377 = vadd.f32 %v367, 1.0
          %v378 = vlog2.pop %v377
          %v379 = vmul.f32 %v378, 0.6931472
          %v380 = vmul.f32 -0.5, %v367
          %v381 = vadd.f32 %v380, 1.0
          %v382 = vmul.f32 %v381, %v367
          %v383 = vand.u32 2147483647, %v367
          %vm384 = vcmp.lt.f32.partialorder %v383, 0.0004427343
          %v385 = vsel %vm384, %v382, %v379
          %v386 = vadd.f32 %v358, %v376
          %v387 = vadd.f32 %v359, %v385
          %v388 = vadd.f32 %v386, %v387
          %v389 = vadd.f32 %v345, %v388
          %390 = vst [vmem:[#allocation2] sm:$0xff] %v389
        $region52: #{tpu_custom_call.1} parent=31 // pred_fallthru
          _
        %p391 = scmp.eq.s32.totalorder %s335, 0
        // Predicated region
        $region53: #{tpu_custom_call.1} parent=31 // pred_check
          %p392 = pneg %p391
        $region54: #{tpu_custom_call.1} parent=31 // pred_check_branch
          %394 = sbr.rel (%p392) target = $region56
        $region55: #{tpu_custom_call.1} parent=31 // pred_region
          %v395 = vld [vmem:[#allocation2] sm:$0xff]
          %v396 = vld [vmem:[%s266] sm:$0xff]
          %v397 = vld [vmem:[%s266 + $0x8] sm:$0xff]
          %v398 = vld [vmem:[%s275] sm:$0xff]
          %v399 = vld [vmem:[%s275 + $0x8] sm:$0xff]
          %v400 = vsub.f32 %v396, %v398
          %v401 = vsub.f32 %v397, %v399
          %v402 = vld [vmem:[%s284] sm:$0xff]
          %v403 = vld [vmem:[%s284 + $0x8] sm:$0xff]
          %v404 = vmax.f32 %v400, 0.0
          %v405 = vmax.f32 %v401, 0.0
          %v406 = vmul.f32 %v400, %v402
          %v407 = vmul.f32 %v401, %v403
          %v408 = vsub.f32 %v404, %v406
          %v409 = vsub.f32 %v405, %v407
          %v410 = vand.u32 2147483647, %v400
          %v411 = vand.u32 2147483647, %v401
          %v412 = vsub.f32 0.0, %v410
          %v413 = vsub.f32 0.0, %v411
          %v414 = vmul.f32 %v412, 1.442695
          %v415 = vpow.pop %v414
          %v416 = vmul.f32 %v413, 1.442695
          %v417 = vpow.pop %v416
          %v418 = vadd.f32 %v415, 1.0
          %v419 = vlog2.pop %v418
          %v420 = vmul.f32 %v419, 0.6931472
          %v421 = vmul.f32 -0.5, %v415
          %v422 = vadd.f32 %v421, 1.0
          %v423 = vmul.f32 %v422, %v415
          %v424 = vand.u32 2147483647, %v415
          %vm425 = vcmp.lt.f32.partialorder %v424, 0.0004427343
          %v426 = vsel %vm425, %v423, %v420
          %v427 = vadd.f32 %v417, 1.0
          %v428 = vlog2.pop %v427
          %v429 = vmul.f32 %v428, 0.6931472
          %v430 = vmul.f32 -0.5, %v417
          %v431 = vadd.f32 %v430, 1.0
          %v432 = vmul.f32 %v431, %v417
          %v433 = vand.u32 2147483647, %v417
          %vm434 = vcmp.lt.f32.partialorder %v433, 0.0004427343
          %v435 = vsel %vm434, %v432, %v429
          %v436 = vadd.f32 %v408, %v426
          %v437 = vadd.f32 %v409, %v435
          %v438 = vlaneseq
          %v439 = vshrl.u32 %v438, 7
          %v440 = vadd.s32 %v439, 8
          %v441 = vlaneseq
          %v442 = vand.u32 %v441, 127
          %v443 = vmul.u32 %v439, 128
          %v444 = vmul.u32 %v440, 128
          %v445 = vadd.s32 %v443, %v442
          %v446 = vadd.s32 %v444, %v442
          %s447 = smul.u32 %s335, 2048
          %s448 = ssub.s32 300, %s447
          %v449 = vstv %s448
          %vm450 = vcmp.lt.s32.totalorder %v445, %v449
          %vm451 = vcmp.lt.s32.totalorder %v446, %v449
          %v452 = vsel %vm450, %v436, 0.0
          %v453 = vsel %vm451, %v437, 0.0
          %v454 = vadd.f32 %v452, %v453
          %v455 = vadd.f32 %v395, %v454
          %456 = vst [vmem:[#allocation2] sm:$0xff] %v455
        $region56: #{tpu_custom_call.1} parent=31 // pred_fallthru
          _
        // Predicated region
        $region57: #{tpu_custom_call.1} parent=31 // pred_check
          %p457 = pneg %p336
        $region58: #{tpu_custom_call.1} parent=31 // pred_check_branch
          %459 = sbr.rel (%p457) target = $region60
        $region59: #{tpu_custom_call.1} parent=31 // pred_region
          %v460 = vld [vmem:[#allocation2] sm:$0xff]
          %461 = vst [vmem:[%s316] sm:$0xff] %v460
        $region60: #{tpu_custom_call.1} parent=31 // pred_fallthru
          _
        %s462 = sand.u32 %s139, 1
        %s463 = scalar_lea.sflag [#allocation5], %s462
        %s464 = sand.u32 %s139, 1
        %s465 = smul.addr %s464, 8
        %s466 = scalar_lea.vmem [#allocation9], %s465
        // Predicated region
        $region61: #{tpu_custom_call.1} parent=31 // pred_check
          %p467 = pneg %p149
        $region62: #{tpu_custom_call.1} parent=31 // pred_check_branch
          %469 = sbr.rel (%p467) target = $region64
        $region63: #{tpu_custom_call.1} parent=31 // pred_region
          %s471 = ssub.s32 128, 128
          %472 = vsyncadd %s463, %s471
          %s473 = smul.addr %s27, 128
          %s474 = scalar_lea.hbm %s3, %s473
          %s476 = sshll.u32 %s466, 4
          %s477 = int_to_ptr.vmem [resolvable:$true] %s476
          %479 = dma.vmem_to_hbm [thread:$0]  %s477, 128, %s474, %s463
        $region64: #{tpu_custom_call.1} parent=31 // pred_fallthru
          _
      $region32: #{tpu_custom_call.1} parent=5 // pred_fallthru
        _
      %p480 = scmp.le.s32.totalorder 2, %s18
      // Predicated region
      $region65: #{tpu_custom_call.1} parent=5 // pred_check
        %p481 = pneg %p480
      $region66: #{tpu_custom_call.1} parent=5 // pred_check_branch
        %483 = sbr.rel (%p481) target = $region68
      $region67: #{tpu_custom_call.1} parent=5 // pred_region
        %s484 = ssub.s32 %s18, 2
        // Predicated region
        $region69: #{tpu_custom_call.1} parent=67 // pred_check
          %p485 = pneg %p155
        $region70: #{tpu_custom_call.1} parent=67 // pred_check_branch
          %487 = sbr.rel (%p485) target = $region72
        $region71: #{tpu_custom_call.1} parent=67 // pred_region
          %s488 = sand.u32 %s140, 1
          %s489 = scalar_lea.sflag [#allocation5], %s488
          %s490 = sand.u32 %s140, 1
          %s491 = smul.addr %s490, 8
          %s492 = scalar_lea.vmem [#allocation9], %s491
          %493 = dma.done %s489, 128
        $region72: #{tpu_custom_call.1} parent=67 // pred_fallthru
          _
      $region68: #{tpu_custom_call.1} parent=5 // pred_fallthru
        _
    $region6: #{tpu_custom_call.1} parent=1 // loop_footer
      %s22 = sadd.s32 1, %s18
    $region7: #{tpu_custom_call.1} parent=1 // loop_footer_branch
      %17 = sbr.rel target = $region3
    $region8: #{tpu_custom_call.1} parent=1 // loop_exit
      _
    %494 = vsyncpa [#allocation4], 1
    %s495 = scalar_lea.sflag [#allocation4], 1
    %496 = vsyncpa %s495, 1
    %497 = vsyncpa [#allocation7], 1
    %s498 = scalar_lea.sflag [#allocation7], 1
    %499 = vsyncpa %s498, 1
    %500 = vsyncpa [#allocation5], 1
    %s501 = scalar_lea.sflag [#allocation5], 1
    %502 = vsyncpa %s501, 1

</llo_original>
